<compile_context>
chip_gen: v6e
topology: v6e:2x2x1
jax: 0.10.0
libtpu: 0.0.40
codegen_flags: <defaults>
</compile_context>

<pallas_src>
import functools

import jax
import jax.numpy as jnp
from jax.experimental import pallas as pl
from jax.experimental.pallas import tpu as pltpu


def _round_up(a: int, m: int) -> int:
    return (a + m - 1) // m * m


def _choose_tb(B: int, tb_max: int) -> int:
    """Pick a batch tile: multiple of 128, capped, >=2 tiles when batch allows
    (so the 'parallel' axis splits across v7x's two TensorCores)."""
    tb_max = max(128, (tb_max // 128) * 128)
    b128 = _round_up(B, 128)
    tb = min(tb_max, b128)
    if b128 >= 256 and b128 // tb < 2:
        tb = max(128, _round_up(b128 // 2, 128))
    return tb


def _make_kernel(n_layers: int, compute_dtype, tiled: bool):
    """Fused MLP + linear_out kernel for a fixed layer count.

    Input-ref order: xc, [oh if n_layers>1], (w0_stacked, b0),
    (w, wc, b) * (n_layers-1), w_out, b_out.  Then out_ref [, h_scratch].
    """
    has_oh = n_layers > 1

    def _hidden(refs):
        idx = 0
        xc = refs[idx][...]          # (tb, k0_pad) = [x | one_hot(cats)], bf16
        idx += 1
        oh = None
        if has_oh:
            oh = refs[idx][...]      # (tb, n_cat_pad) bf16
            idx += 1
        # Layer 0: fused [x | oh] @ [w0; wc0]; BN(eval) + bias already folded.
        w0_ref, b0_ref = refs[idx], refs[idx + 1]
        idx += 2
        z = jnp.dot(xc, w0_ref[...], preferred_element_type=jnp.float32) + b0_ref[...]
        # ReLU; Dropout(p=0.2) is identity in eval mode.
        # TODO(synk): training-mode dropout / batch-stats BatchNorm not implemented.
        h = jnp.maximum(z, 0.0).astype(compute_dtype)
        for _ in range(1, n_layers):
            w_ref, wc_ref, b_ref = refs[idx], refs[idx + 1], refs[idx + 2]
            idx += 3
            z = (jnp.dot(h, w_ref[...], preferred_element_type=jnp.float32)
                 + jnp.dot(oh, wc_ref[...], preferred_element_type=jnp.float32)
                 + b_ref[...])
            h = jnp.maximum(z, 0.0).astype(compute_dtype)
        return h, idx

    if not tiled:
        # Whole w_out resident; 1-D grid over batch tiles only.
        def kernel(*refs):
            h, idx = _hidden(refs)
            w_out_ref, b_out_ref, out_ref = refs[idx], refs[idx + 1], refs[idx + 2]
            out_ref[...] = (
                jnp.dot(h, w_out_ref[...], preferred_element_type=jnp.float32)
                + b_out_ref[...]
            ).astype(out_ref.dtype)
        return kernel

    def kernel(*refs):
        w_out_ref, b_out_ref, out_ref, h_ref = refs[-4], refs[-3], refs[-2], refs[-1]

        # NOTE: the hidden-state cache in h_ref relies on grid axis 1 (output
        # tiles, "arbitrary") being the innermost, sequentially iterated axis
        # on a single core.  Do not reorder grid axes or mark axis 1 parallel.
        @pl.when(pl.program_id(1) == 0)
        def _compute_hidden():
            h, _ = _hidden(refs)
            h_ref[...] = h

        out_ref[...] = (
            jnp.dot(h_ref[...], w_out_ref[...], preferred_element_type=jnp.float32)
            + b_out_ref[...]
        ).astype(out_ref.dtype)

    return kernel


def init_params(key, n_input, n_output, n_cat_list, n_layers, n_hidden):
    """Deterministic synthetic parameter init (shapes match the torch module)."""
    n_cat_list = tuple(n_cat_list or ())
    n_cat_total = sum(n_cat_list) if n_cat_list else 1
    eps = 1e-3  # BatchNorm1d eps used by scvi FCLayers
    layers = []
    in_dim = n_input
    for _ in range(n_layers):
        key, k1, k2, k3 = jax.random.split(key, 4)
        w = jax.random.normal(k1, (in_dim, n_hidden), jnp.float32) / jnp.sqrt(in_dim)
        wc = jax.random.normal(k2, (n_cat_total, n_hidden), jnp.float32) * 0.1
        b = jax.random.normal(k3, (1, n_hidden), jnp.float32) * 0.01
        # BatchNorm params at init: gamma=1, beta=0, running mean=0, var=1.
        gamma = jnp.ones((1, n_hidden), jnp.float32)
        beta = jnp.zeros((1, n_hidden), jnp.float32)
        run_mean = jnp.zeros((1, n_hidden), jnp.float32)
        run_var = jnp.ones((1, n_hidden), jnp.float32)
        scale = gamma / jnp.sqrt(run_var + eps)
        shift = beta - run_mean * scale
        layers.append(dict(w=w, wc=wc, b=b, bn_scale=scale, bn_shift=shift))
        in_dim = n_hidden
    key, k1, k2 = jax.random.split(key, 3)
    w_out = jax.random.normal(k1, (n_hidden, n_output), jnp.float32) / jnp.sqrt(n_hidden)
    b_out = jax.random.normal(k2, (1, n_output), jnp.float32) * 0.01
    return dict(layers=layers, w_out=w_out, b_out=b_out)


def _onehot_cats(cat_list, n_cat_list, batch):
    """One-hot encode categorical covariates and concatenate (glue)."""
    if n_cat_list:
        ohs = [jax.nn.one_hot(c, int(n), dtype=jnp.float32)
               for c, n in zip(cat_list, n_cat_list)]
        return jnp.concatenate(ohs, axis=-1)
    return jnp.zeros((batch, 1), jnp.float32)


def _fold_params(params, compute_dtype):
    """Fold BatchNorm(eval) affine + bias into the linear weights, cast to bf16."""
    layers = []
    for layer in params["layers"]:
        scale, shift = layer["bn_scale"], layer["bn_shift"]
        w = (layer["w"] * scale).astype(compute_dtype)
        wc = (layer["wc"] * scale).astype(compute_dtype)
        b = (layer["b"] * scale + shift).astype(jnp.float32)  # biases stay f32
        layers.append((w, wc, b))
    w_out = params["w_out"].astype(compute_dtype)
    b_out = params["b_out"].astype(jnp.float32)
    return layers, w_out, b_out


@functools.partial(
    jax.jit,
    static_argnames=("n_cat_list", "tb", "tn", "compute_dtype", "out_dtype",
                     "max_resident_out"))
def generator_forward(x, cat_list, params, *, n_cat_list=(), tb=512, tn=512,
                      compute_dtype=jnp.bfloat16, out_dtype=jnp.bfloat16,
                      max_resident_out=2048):
    """Pallas forward: p = linear_out(MLP(x, *cat_list))."""
    B, n_input = x.shape
    n_layers = len(params["layers"])
    assert n_layers >= 1
    n_hidden, n_output = params["w_out"].shape
    assert tn % 128 == 0, "tn must be a multiple of 128 (lane width)"

    oh = _onehot_cats(cat_list, n_cat_list, B)
    layers, w_out, b_out = _fold_params(params, compute_dtype)

    # Pad one-hot width to a multiple of 16 (bf16 sublane packing of wc's K).
    n_cat = oh.shape[1]
    n_cat_pad = max(_round_up(n_cat, 16), 16)
    if n_cat_pad != n_cat:
        oh = jnp.pad(oh, ((0, 0), (0, n_cat_pad - n_cat)))
        layers = [(w, jnp.pad(wc, ((0, n_cat_pad - n_cat), (0, 0))), b)
                  for (w, wc, b) in layers]

    # Fuse the layer-0 categorical matmul: xc = [x | oh], w0_stacked = [w0; wc0].
    w0, wc0, b0 = layers[0]
    k0 = n_input + n_cat_pad
    k0_pad = _round_up(k0, 16)
    w0_stacked = jnp.concatenate([w0, wc0], axis=0)
    if k0_pad != k0:
        w0_stacked = jnp.pad(w0_stacked, ((0, k0_pad - k0), (0, 0)))

    # Batch tile: multiple of 128, >=2 tiles when batch permits (v7x megacore).
    tb_eff = _choose_tb(B, tb)
    Bp = _round_up(B, tb_eff)

    xc = jnp.concatenate(
        [x.astype(compute_dtype), oh.astype(compute_dtype)], axis=1)
    if k0_pad != k0:
        xc = jnp.pad(xc, ((0, 0), (0, k0_pad - k0)))
    oh_p = oh.astype(compute_dtype)
    if Bp != B:
        xc = jnp.pad(xc, ((0, Bp - B), (0, 0)))
        oh_p = jnp.pad(oh_p, ((0, Bp - B), (0, 0)))

    # Output padding + path selection.
    n_out_128 = _round_up(n_output, 128)
    resident = n_out_128 <= max_resident_out
    if resident:
        tn_eff = n_out_pad = n_out_128
    else:
        tn_eff = min(tn, n_out_128)
        n_out_pad = _round_up(n_output, tn_eff)
    if n_out_pad != n_output:
        w_out = jnp.pad(w_out, ((0, 0), (0, n_out_pad - n_output)))
        b_out = jnp.pad(b_out, ((0, 0), (0, n_out_pad - n_output)))

    # Inputs (order must match the kernel's ref order).
    inputs = [xc]
    if n_layers > 1:
        inputs.append(oh_p)
    inputs += [w0_stacked, b0]
    for (w, wc, b) in layers[1:]:
        inputs += [w, wc, b]
    inputs += [w_out, b_out]

    if resident:
        in_specs = [pl.BlockSpec((tb_eff, k0_pad), lambda i: (i, 0))]
        if n_layers > 1:
            in_specs.append(pl.BlockSpec((tb_eff, n_cat_pad), lambda i: (i, 0)))
        in_specs += [pl.BlockSpec(w0_stacked.shape, lambda i: (0, 0)),
                     pl.BlockSpec(b0.shape, lambda i: (0, 0))]
        for (w, wc, b) in layers[1:]:
            in_specs += [pl.BlockSpec(w.shape, lambda i: (0, 0)),
                         pl.BlockSpec(wc.shape, lambda i: (0, 0)),
                         pl.BlockSpec(b.shape, lambda i: (0, 0))]
        in_specs += [pl.BlockSpec((n_hidden, n_out_pad), lambda i: (0, 0)),
                     pl.BlockSpec((1, n_out_pad), lambda i: (0, 0))]
        out_spec = pl.BlockSpec((tb_eff, n_out_pad), lambda i: (i, 0))
        grid = (Bp // tb_eff,)
        dims = ("parallel",)
        scratch = []
    else:
        in_specs = [pl.BlockSpec((tb_eff, k0_pad), lambda i, j: (i, 0))]
        if n_layers > 1:
            in_specs.append(pl.BlockSpec((tb_eff, n_cat_pad), lambda i, j: (i, 0)))
        in_specs += [pl.BlockSpec(w0_stacked.shape, lambda i, j: (0, 0)),
                     pl.BlockSpec(b0.shape, lambda i, j: (0, 0))]
        for (w, wc, b) in layers[1:]:
            in_specs += [pl.BlockSpec(w.shape, lambda i, j: (0, 0)),
                         pl.BlockSpec(wc.shape, lambda i, j: (0, 0)),
                         pl.BlockSpec(b.shape, lambda i, j: (0, 0))]
        # Streamed w_out tile; 3-deep buffering hides the fetch behind the
        # short per-j matmul.
        in_specs += [pl.BlockSpec((n_hidden, tn_eff), lambda i, j: (0, j),
                                  pipeline_mode=pl.Buffered(3)),
                     pl.BlockSpec((1, tn_eff), lambda i, j: (0, j))]
        out_spec = pl.BlockSpec((tb_eff, tn_eff), lambda i, j: (i, j))
        grid = (Bp // tb_eff, n_out_pad // tn_eff)
        dims = ("parallel", "arbitrary")
        scratch = [pltpu.VMEM((tb_eff, n_hidden), compute_dtype)]

    out = pl.pallas_call(
        _make_kernel(n_layers, compute_dtype, tiled=not resident),
        out_shape=jax.ShapeDtypeStruct((Bp, n_out_pad), out_dtype),
        grid=grid,
        in_specs=in_specs,
        out_specs=out_spec,
        scratch_shapes=scratch,
        compiler_params=pltpu.CompilerParams(
            dimension_semantics=dims,
            vmem_limit_bytes=48 * 1024 * 1024),
    )(*inputs)

    if Bp == B and n_out_pad == n_output:
        return out          # no padding -> no extra HBM round-trip
    return out[:B, :n_output]


def generator_reference_matched(x, cat_list, params, n_cat_list,
                                compute_dtype=jnp.bfloat16):
    """Pure-JAX reference using the same folded / bf16-cast parameters."""
    B = x.shape[0]
    oh = _onehot_cats(cat_list, n_cat_list, B).astype(compute_dtype)
    layers, w_out, b_out = _fold_params(params, compute_dtype)
    h = x.astype(compute_dtype)
    for (w, wc, b) in layers:
        z = (jnp.dot(h, w, preferred_element_type=jnp.float32)
             + jnp.dot(oh, wc, preferred_element_type=jnp.float32) + b)
        h = jnp.maximum(z, 0.0).astype(compute_dtype)
    return jnp.dot(h, w_out, preferred_element_type=jnp.float32) + b_out


def generator_reference_f32(x, cat_list, params, n_cat_list):
    """Pure-JAX f32 reference of the original (unfolded) forward."""
    B = x.shape[0]
    oh = _onehot_cats(cat_list, n_cat_list, B)
    h = x.astype(jnp.float32)
    for layer in params["layers"]:
        z = h @ layer["w"] + oh @ layer["wc"] + layer["b"]
        z = z * layer["bn_scale"] + layer["bn_shift"]
        h = jnp.maximum(z, 0.0)
    return h @ params["w_out"] + params["b_out"]


if __name__ == "__main__":
    # Small shapes consistent with the module: n_hidden=128, two categorical
    # covariates, non-aligned batch / gene counts to exercise padding, the
    # resident-w_out path, and the streamed (tiled-j) path.
    B = 200
    n_input, n_hidden, n_output = 32, 128, 200
    n_layers = 2
    n_cat_list = (3, 2)

    key = jax.random.PRNGKey(0)
    key, kx, kc0, kc1, kp = jax.random.split(key, 5)
    x = jax.random.normal(kx, (B, n_input), jnp.float32)
    cat0 = jax.random.randint(kc0, (B,), 0, n_cat_list[0])
    cat1 = jax.random.randint(kc1, (B,), 0, n_cat_list[1])
    cats = (cat0, cat1)

    params = init_params(kp, n_input, n_output, n_cat_list, n_layers, n_hidden)

    ref_matched = generator_reference_matched(x, cats, params, n_cat_list,
                                              jnp.bfloat16)
    ref_f32 = generator_reference_f32(x, cats, params, n_cat_list)

    # Path 1: resident w_out (default), bf16 output, auto batch tiling.
    out1 = generator_forward(x, cats, params, n_cat_list=n_cat_list)
    out1 = jax.block_until_ready(out1)
    assert out1.shape == (B, n_output) and out1.dtype == jnp.bfloat16
    assert jnp.allclose(out1.astype(jnp.float32), ref_matched,
                        atol=3e-2, rtol=3e-2), \
        "resident path: mismatch vs matched-precision (bf16) reference"
    assert jnp.allclose(out1.astype(jnp.float32), ref_f32,
                        atol=1e-1, rtol=1e-1), \
        "resident path: mismatch vs f32 reference"

    # Path 2: streamed w_out (tiled j axis + hidden-state scratch), f32 output.
    out2 = generator_forward(x, cats, params, n_cat_list=n_cat_list,
                             tb=128, tn=128, out_dtype=jnp.float32,
                             max_resident_out=0)
    out2 = jax.block_until_ready(out2)
    assert out2.shape == (B, n_output) and out2.dtype == jnp.float32
    assert jnp.allclose(out2, ref_matched, atol=1e-2, rtol=1e-2), \
        "tiled path: mismatch vs matched-precision (bf16) reference"
    assert jnp.allclose(out2, ref_f32, atol=1e-1, rtol=1e-1), \
        "tiled path: mismatch vs f32 reference"

    print("KERNEL_OK")
</pallas_src>

<mosaic_0001>
module attributes {stable_mosaic.version = 11 : i64} {
  func.func @kernel(%arg0: i32, %arg1: memref<128x48xbf16, #tpu.memory_space<vmem>>, %arg2: memref<128x16xbf16, #tpu.memory_space<vmem>>, %arg3: memref<48x128xbf16, #tpu.memory_space<vmem>>, %arg4: memref<1x128xf32, #tpu.memory_space<vmem>>, %arg5: memref<128x128xbf16, #tpu.memory_space<vmem>>, %arg6: memref<16x128xbf16, #tpu.memory_space<vmem>>, %arg7: memref<1x128xf32, #tpu.memory_space<vmem>>, %arg8: memref<128x256xbf16, #tpu.memory_space<vmem>>, %arg9: memref<1x256xf32, #tpu.memory_space<vmem>>, %arg10: memref<128x256xbf16, #tpu.memory_space<vmem>>) attributes {dimension_semantics = [#tpu.dimension_semantics<parallel>], iteration_bounds = array<i64: 2>, scalar_prefetch = 0 : i64, scratch_operands = 0 : i64, tpu.core_type = #tpu.core_type<tc>, window_params = [{transform_indices = @transform_0, window_bounds = array<i64: 128, 48>}, {transform_indices = @transform_1, window_bounds = array<i64: 128, 16>}, {pipeline_mode = #tpu.pipeline_mode<synchronous>, transform_indices = @transform_2, window_bounds = array<i64: 48, 128>}, {pipeline_mode = #tpu.pipeline_mode<synchronous>, transform_indices = @transform_3, window_bounds = array<i64: 1, 128>}, {pipeline_mode = #tpu.pipeline_mode<synchronous>, transform_indices = @transform_4, window_bounds = array<i64: 128, 128>}, {pipeline_mode = #tpu.pipeline_mode<synchronous>, transform_indices = @transform_5, window_bounds = array<i64: 16, 128>}, {pipeline_mode = #tpu.pipeline_mode<synchronous>, transform_indices = @transform_6, window_bounds = array<i64: 1, 128>}, {pipeline_mode = #tpu.pipeline_mode<synchronous>, transform_indices = @transform_7, window_bounds = array<i64: 128, 256>}, {pipeline_mode = #tpu.pipeline_mode<synchronous>, transform_indices = @transform_8, window_bounds = array<i64: 1, 256>}, {transform_indices = @transform_9, window_bounds = array<i64: 128, 256>}]} {
    %c0 = arith.constant 0 : index
    %c0_0 = arith.constant 0 : index
    %0 = vector.load %arg1[%c0, %c0_0] : memref<128x48xbf16, #tpu.memory_space<vmem>>, vector<128x48xbf16>
    %c0_1 = arith.constant 0 : index
    %c0_2 = arith.constant 0 : index
    %1 = vector.load %arg2[%c0_1, %c0_2] : memref<128x16xbf16, #tpu.memory_space<vmem>>, vector<128x16xbf16>
    %c0_3 = arith.constant 0 : index
    %c0_4 = arith.constant 0 : index
    %2 = vector.load %arg3[%c0_3, %c0_4] : memref<48x128xbf16, #tpu.memory_space<vmem>>, vector<48x128xbf16>
    %cst = arith.constant dense<0.000000e+00> : vector<128x128xf32>
    %3 = tpu.matmul %0, %2, %cst {dimension_numbers = #tpu.dot_dimension_numbers<[1], [0], [0], [1], [0, 0, 1, 1], [], []>} : vector<128x48xbf16>, vector<48x128xbf16>, vector<128x128xf32> -> vector<128x128xf32>
    %c0_5 = arith.constant 0 : index
    %c0_6 = arith.constant 0 : index
    %4 = vector.load %arg4[%c0_5, %c0_6] : memref<1x128xf32, #tpu.memory_space<vmem>>, vector<1x128xf32>
    %5 = vector.broadcast %4 : vector<1x128xf32> to vector<128x128xf32>
    %6 = arith.addf %3, %5 : vector<128x128xf32>
    %cst_7 = arith.constant 0.000000e+00 : f32
    %7 = vector.broadcast %cst_7 : f32 to vector<128x128xf32>
    %8 = arith.maximumf %6, %7 : vector<128x128xf32>
    %9 = arith.truncf %8 : vector<128x128xf32> to vector<128x128xbf16>
    %c0_8 = arith.constant 0 : index
    %c0_9 = arith.constant 0 : index
    %10 = vector.load %arg5[%c0_8, %c0_9] : memref<128x128xbf16, #tpu.memory_space<vmem>>, vector<128x128xbf16>
    %cst_10 = arith.constant dense<0.000000e+00> : vector<128x128xf32>
    %11 = tpu.matmul %9, %10, %cst_10 {dimension_numbers = #tpu.dot_dimension_numbers<[1], [0], [0], [1], [0, 0, 1, 1], [], []>} : vector<128x128xbf16>, vector<128x128xbf16>, vector<128x128xf32> -> vector<128x128xf32>
    %c0_11 = arith.constant 0 : index
    %c0_12 = arith.constant 0 : index
    %12 = vector.load %arg6[%c0_11, %c0_12] : memref<16x128xbf16, #tpu.memory_space<vmem>>, vector<16x128xbf16>
    %cst_13 = arith.constant dense<0.000000e+00> : vector<128x128xf32>
    %13 = tpu.matmul %1, %12, %cst_13 {dimension_numbers = #tpu.dot_dimension_numbers<[1], [0], [0], [1], [0, 0, 1, 1], [], []>} : vector<128x16xbf16>, vector<16x128xbf16>, vector<128x128xf32> -> vector<128x128xf32>
    %14 = arith.addf %11, %13 : vector<128x128xf32>
    %c0_14 = arith.constant 0 : index
    %c0_15 = arith.constant 0 : index
    %15 = vector.load %arg7[%c0_14, %c0_15] : memref<1x128xf32, #tpu.memory_space<vmem>>, vector<1x128xf32>
    %16 = vector.broadcast %15 : vector<1x128xf32> to vector<128x128xf32>
    %17 = arith.addf %14, %16 : vector<128x128xf32>
    %cst_16 = arith.constant 0.000000e+00 : f32
    %18 = vector.broadcast %cst_16 : f32 to vector<128x128xf32>
    %19 = arith.maximumf %17, %18 : vector<128x128xf32>
    %20 = arith.truncf %19 : vector<128x128xf32> to vector<128x128xbf16>
    %c0_17 = arith.constant 0 : index
    %c0_18 = arith.constant 0 : index
    %21 = vector.load %arg8[%c0_17, %c0_18] : memref<128x256xbf16, #tpu.memory_space<vmem>>, vector<128x256xbf16>
    %cst_19 = arith.constant dense<0.000000e+00> : vector<128x256xf32>
    %22 = tpu.matmul %20, %21, %cst_19 {dimension_numbers = #tpu.dot_dimension_numbers<[1], [0], [0], [1], [0, 0, 1, 1], [], []>} : vector<128x128xbf16>, vector<128x256xbf16>, vector<128x256xf32> -> vector<128x256xf32>
    %c0_20 = arith.constant 0 : index
    %c0_21 = arith.constant 0 : index
    %23 = vector.load %arg9[%c0_20, %c0_21] : memref<1x256xf32, #tpu.memory_space<vmem>>, vector<1x256xf32>
    %24 = vector.broadcast %23 : vector<1x256xf32> to vector<128x256xf32>
    %25 = arith.addf %22, %24 : vector<128x256xf32>
    %26 = arith.truncf %25 : vector<128x256xf32> to vector<128x256xbf16>
    %c0_22 = arith.constant 0 : index
    %c0_23 = arith.constant 0 : index
    %27 = vector.load %arg10[%c0_22, %c0_23] : memref<128x256xbf16, #tpu.memory_space<vmem>>, vector<128x256xbf16>
    tpu.vector_store %arg10[%c0_22, %c0_23], %26 {strides = array<i32>} : memref<128x256xbf16, #tpu.memory_space<vmem>>, vector<128x256xbf16>,
    return
  }
  func.func @transform_0(%arg0: i32) -> (i32, i32) {
    %c0_i32 = arith.constant 0 : i32
    %c0_i32_0 = arith.constant 0 : i32
    return %arg0, %c0_i32 : i32, i32
  }
  func.func @transform_1(%arg0: i32) -> (i32, i32) {
    %c0_i32 = arith.constant 0 : i32
    %c0_i32_0 = arith.constant 0 : i32
    return %arg0, %c0_i32 : i32, i32
  }
  func.func @transform_2(%arg0: i32) -> (i32, i32) {
    %c0_i32 = arith.constant 0 : i32
    %c0_i32_0 = arith.constant 0 : i32
    %c0_i32_1 = arith.constant 0 : i32
    return %c0_i32, %c0_i32_0 : i32, i32
  }
  func.func @transform_3(%arg0: i32) -> (i32, i32) {
    %c0_i32 = arith.constant 0 : i32
    %c0_i32_0 = arith.constant 0 : i32
    %c0_i32_1 = arith.constant 0 : i32
    return %c0_i32, %c0_i32_0 : i32, i32
  }
  func.func @transform_4(%arg0: i32) -> (i32, i32) {
    %c0_i32 = arith.constant 0 : i32
    %c0_i32_0 = arith.constant 0 : i32
    %c0_i32_1 = arith.constant 0 : i32
    return %c0_i32, %c0_i32_0 : i32, i32
  }
  func.func @transform_5(%arg0: i32) -> (i32, i32) {
    %c0_i32 = arith.constant 0 : i32
    %c0_i32_0 = arith.constant 0 : i32
    %c0_i32_1 = arith.constant 0 : i32
    return %c0_i32, %c0_i32_0 : i32, i32
  }
  func.func @transform_6(%arg0: i32) -> (i32, i32) {
    %c0_i32 = arith.constant 0 : i32
    %c0_i32_0 = arith.constant 0 : i32
    %c0_i32_1 = arith.constant 0 : i32
    return %c0_i32, %c0_i32_0 : i32, i32
  }
  func.func @transform_7(%arg0: i32) -> (i32, i32) {
    %c0_i32 = arith.constant 0 : i32
    %c0_i32_0 = arith.constant 0 : i32
    %c0_i32_1 = arith.constant 0 : i32
    return %c0_i32, %c0_i32_0 : i32, i32
  }
  func.func @transform_8(%arg0: i32) -> (i32, i32) {
    %c0_i32 = arith.constant 0 : i32
    %c0_i32_0 = arith.constant 0 : i32
    %c0_i32_1 = arith.constant 0 : i32
    return %c0_i32, %c0_i32_0 : i32, i32
  }
  func.func @transform_9(%arg0: i32) -> (i32, i32) {
    %c0_i32 = arith.constant 0 : i32
    %c0_i32_0 = arith.constant 0 : i32
    return %arg0, %c0_i32 : i32, i32
  }
}

</mosaic_0001>

<llo_original>
// kernel: generator_forward.1
$region0: #{generator_forward.1}
  #allocation0 [shape = 'u32[]', space=smem, size = 0x4, offset = 0x4, fixed_abs, tag = 'smem constant byte address 0x4 - core index']
  #allocation1 [shape = 'u32[144,128]{1,0:T(1,128)}', space=vmem, size = 0x12000, scoped, tag = 'internal scratch']
  %s0 = inlined_call_operand.vmem [shape: bf16[256,48], index: 0, kind: input, shape index: {}]
  %s1 = inlined_call_operand.vmem [shape: bf16[256,16], index: 1, kind: input, shape index: {}]
  %s2 = inlined_call_operand.vmem [shape: bf16[48,128], index: 2, kind: input, shape index: {}]
  %s3 = inlined_call_operand.vmem [shape: f32[1,128], index: 3, kind: input, shape index: {}]
  %s4 = inlined_call_operand.vmem [shape: bf16[128,128], index: 4, kind: input, shape index: {}]
  %s5 = inlined_call_operand.vmem [shape: bf16[16,128], index: 5, kind: input, shape index: {}]
  %s6 = inlined_call_operand.vmem [shape: f32[1,128], index: 6, kind: input, shape index: {}]
  %s7 = inlined_call_operand.vmem [shape: bf16[128,256], index: 7, kind: input, shape index: {}]
  %s8 = inlined_call_operand.vmem [shape: f32[1,256], index: 8, kind: input, shape index: {}]
  %s9 = inlined_call_operand.vmem [shape: bf16[256,256], index: 9, kind: output, shape index: {}]
  %s10 = sld [smem:[#allocation0]]
  $region69: #{generator_forward.1} parent=0
    _
  %s12 = ssub.s32 1, %s10
  %s13 = scalar_select 0, %s12, %s10
  loop: start=0, step=1, limit=4
  $region2: #{generator_forward.1} parent=0 // loop_pre_header
    _
  $region3: #{generator_forward.1} parent=0 // loop_header
    %s15 = sphi 0, %s19
    %p16 = scmp.ge.s32.totalorder %s15, 4
    %s25 = sphi 0, %s27
    %s28 = sphi 0, %s25
    %s29 = sphi 0, %s28
    %s45 = sphi 0, %s29
    %s51 = sphi 0, %s53
    %s54 = sphi 0, %s51
    %s55 = sphi 0, %s54
    %s71 = sphi 0, %s55
    %s75 = sphi 0, %s75
    %s77 = sphi 0, %s75
    %s78 = sphi 0, %s77
    %s92 = sphi 0, %s78
    %s96 = sphi 0, %s96
    %s98 = sphi 0, %s96
    %s99 = sphi 0, %s98
    %s113 = sphi 0, %s99
    %s117 = sphi 0, %s117
    %s119 = sphi 0, %s117
    %s120 = sphi 0, %s119
    %s134 = sphi 0, %s120
    %s138 = sphi 0, %s138
    %s140 = sphi 0, %s138
    %s141 = sphi 0, %s140
    %s155 = sphi 0, %s141
    %s159 = sphi 0, %s159
    %s161 = sphi 0, %s159
    %s162 = sphi 0, %s161
    %s176 = sphi 0, %s162
    %s180 = sphi 0, %s180
    %s182 = sphi 0, %s180
    %s183 = sphi 0, %s182
    %s197 = sphi 0, %s183
    %s201 = sphi 0, %s201
    %s203 = sphi 0, %s201
    %s204 = sphi 0, %s203
    %s218 = sphi 0, %s204
    %s224 = sphi 0, %s226
    %s227 = sphi 0, %s224
    %s228 = sphi 0, %s227
    %s244 = sphi 0, %s228
  $region4: #{generator_forward.1} parent=0 // loop_header_branch
    %18 = sbr.rel (%p16) target = $region8
  $region5: #{generator_forward.1} parent=0 // loop_body
    %s20 = ssub.s32 %s15, 1
    %s21 = ssub.s32 %s15, 2
    %s22 = sadd.s32 %s15, 1
    %s23 = ssub.s32 %s15, %s22
    %p24 = scmp.eq.s32.totalorder %s23, 0
    %s26 = sadd.s32 %s25, 1
    %s27 = scalar_select %p24, %s25, %s26
    %p30 = pneg %p24
    %p31 = scmp.eq.s32.totalorder %s15, 1
    %p32 = por %p30, %p31
    %p33 = scmp.ne.s32.totalorder %s25, %s28
    %p34 = scmp.eq.s32.totalorder %s15, 0
    %p35 = por %p33, %p34
    %p36 = scmp.ne.s32.totalorder %s25, %s28
    %p37 = scmp.eq.s32.totalorder %s20, 1
    %p38 = por %p36, %p37
    %p39 = scmp.ne.s32.totalorder %s28, %s29
    %p40 = scmp.eq.s32.totalorder %s20, 0
    %p41 = por %p39, %p40
    %p42 = scmp.ne.s32.totalorder %s28, %s29
    %p43 = scmp.eq.s32.totalorder %s21, 1
    %p44 = por %p42, %p43
    %p46 = scmp.ne.s32.totalorder %s29, %s45
    %p47 = scmp.eq.s32.totalorder %s21, 0
    %p48 = por %p46, %p47
    %s49 = ssub.s32 %s15, %s22
    %p50 = scmp.eq.s32.totalorder %s49, 0
    %s52 = sadd.s32 %s51, 1
    %s53 = scalar_select %p50, %s51, %s52
    %p56 = pneg %p50
    %p57 = scmp.eq.s32.totalorder %s15, 1
    %p58 = por %p56, %p57
    %p59 = scmp.ne.s32.totalorder %s51, %s54
    %p60 = scmp.eq.s32.totalorder %s15, 0
    %p61 = por %p59, %p60
    %p62 = scmp.ne.s32.totalorder %s51, %s54
    %p63 = scmp.eq.s32.totalorder %s20, 1
    %p64 = por %p62, %p63
    %p65 = scmp.ne.s32.totalorder %s54, %s55
    %p66 = scmp.eq.s32.totalorder %s20, 0
    %p67 = por %p65, %p66
    %p68 = scmp.ne.s32.totalorder %s54, %s55
    %p69 = scmp.eq.s32.totalorder %s21, 1
    %p70 = por %p68, %p69
    %p72 = scmp.ne.s32.totalorder %s55, %s71
    %p73 = scmp.eq.s32.totalorder %s21, 0
    %p74 = por %p72, %p73
    %s76 = sadd.s32 %s75, 1
    %p79 = scmp.eq.s32.totalorder %s15, 1
    %p80 = scmp.ne.s32.totalorder %s75, %s77
    %p81 = scmp.eq.s32.totalorder %s15, 0
    %p82 = por %p80, %p81
    %p83 = scmp.ne.s32.totalorder %s75, %s77
    %p84 = scmp.eq.s32.totalorder %s20, 1
    %p85 = por %p83, %p84
    %p86 = scmp.ne.s32.totalorder %s77, %s78
    %p87 = scmp.eq.s32.totalorder %s20, 0
    %p88 = por %p86, %p87
    %p89 = scmp.ne.s32.totalorder %s77, %s78
    %p90 = scmp.eq.s32.totalorder %s21, 1
    %p91 = por %p89, %p90
    %p93 = scmp.ne.s32.totalorder %s78, %s92
    %p94 = scmp.eq.s32.totalorder %s21, 0
    %p95 = por %p93, %p94
    %s97 = sadd.s32 %s96, 1
    %p100 = scmp.eq.s32.totalorder %s15, 1
    %p101 = scmp.ne.s32.totalorder %s96, %s98
    %p102 = scmp.eq.s32.totalorder %s15, 0
    %p103 = por %p101, %p102
    %p104 = scmp.ne.s32.totalorder %s96, %s98
    %p105 = scmp.eq.s32.totalorder %s20, 1
    %p106 = por %p104, %p105
    %p107 = scmp.ne.s32.totalorder %s98, %s99
    %p108 = scmp.eq.s32.totalorder %s20, 0
    %p109 = por %p107, %p108
    %p110 = scmp.ne.s32.totalorder %s98, %s99
    %p111 = scmp.eq.s32.totalorder %s21, 1
    %p112 = por %p110, %p111
    %p114 = scmp.ne.s32.totalorder %s99, %s113
    %p115 = scmp.eq.s32.totalorder %s21, 0
    %p116 = por %p114, %p115
    %s118 = sadd.s32 %s117, 1
    %p121 = scmp.eq.s32.totalorder %s15, 1
    %p122 = scmp.ne.s32.totalorder %s117, %s119
    %p123 = scmp.eq.s32.totalorder %s15, 0
    %p124 = por %p122, %p123
    %p125 = scmp.ne.s32.totalorder %s117, %s119
    %p126 = scmp.eq.s32.totalorder %s20, 1
    %p127 = por %p125, %p126
    %p128 = scmp.ne.s32.totalorder %s119, %s120
    %p129 = scmp.eq.s32.totalorder %s20, 0
    %p130 = por %p128, %p129
    %p131 = scmp.ne.s32.totalorder %s119, %s120
    %p132 = scmp.eq.s32.totalorder %s21, 1
    %p133 = por %p131, %p132
    %p135 = scmp.ne.s32.totalorder %s120, %s134
    %p136 = scmp.eq.s32.totalorder %s21, 0
    %p137 = por %p135, %p136
    %s139 = sadd.s32 %s138, 1
    %p142 = scmp.eq.s32.totalorder %s15, 1
    %p143 = scmp.ne.s32.totalorder %s138, %s140
    %p144 = scmp.eq.s32.totalorder %s15, 0
    %p145 = por %p143, %p144
    %p146 = scmp.ne.s32.totalorder %s138, %s140
    %p147 = scmp.eq.s32.totalorder %s20, 1
    %p148 = por %p146, %p147
    %p149 = scmp.ne.s32.totalorder %s140, %s141
    %p150 = scmp.eq.s32.totalorder %s20, 0
    %p151 = por %p149, %p150
    %p152 = scmp.ne.s32.totalorder %s140, %s141
    %p153 = scmp.eq.s32.totalorder %s21, 1
    %p154 = por %p152, %p153
    %p156 = scmp.ne.s32.totalorder %s141, %s155
    %p157 = scmp.eq.s32.totalorder %s21, 0
    %p158 = por %p156, %p157
    %s160 = sadd.s32 %s159, 1
    %p163 = scmp.eq.s32.totalorder %s15, 1
    %p164 = scmp.ne.s32.totalorder %s159, %s161
    %p165 = scmp.eq.s32.totalorder %s15, 0
    %p166 = por %p164, %p165
    %p167 = scmp.ne.s32.totalorder %s159, %s161
    %p168 = scmp.eq.s32.totalorder %s20, 1
    %p169 = por %p167, %p168
    %p170 = scmp.ne.s32.totalorder %s161, %s162
    %p171 = scmp.eq.s32.totalorder %s20, 0
    %p172 = por %p170, %p171
    %p173 = scmp.ne.s32.totalorder %s161, %s162
    %p174 = scmp.eq.s32.totalorder %s21, 1
    %p175 = por %p173, %p174
    %p177 = scmp.ne.s32.totalorder %s162, %s176
    %p178 = scmp.eq.s32.totalorder %s21, 0
    %p179 = por %p177, %p178
    %s181 = sadd.s32 %s180, 1
    %p184 = scmp.eq.s32.totalorder %s15, 1
    %p185 = scmp.ne.s32.totalorder %s180, %s182
    %p186 = scmp.eq.s32.totalorder %s15, 0
    %p187 = por %p185, %p186
    %p188 = scmp.ne.s32.totalorder %s180, %s182
    %p189 = scmp.eq.s32.totalorder %s20, 1
    %p190 = por %p188, %p189
    %p191 = scmp.ne.s32.totalorder %s182, %s183
    %p192 = scmp.eq.s32.totalorder %s20, 0
    %p193 = por %p191, %p192
    %p194 = scmp.ne.s32.totalorder %s182, %s183
    %p195 = scmp.eq.s32.totalorder %s21, 1
    %p196 = por %p194, %p195
    %p198 = scmp.ne.s32.totalorder %s183, %s197
    %p199 = scmp.eq.s32.totalorder %s21, 0
    %p200 = por %p198, %p199
    %s202 = sadd.s32 %s201, 1
    %p205 = scmp.eq.s32.totalorder %s15, 1
    %p206 = scmp.ne.s32.totalorder %s201, %s203
    %p207 = scmp.eq.s32.totalorder %s15, 0
    %p208 = por %p206, %p207
    %p209 = scmp.ne.s32.totalorder %s201, %s203
    %p210 = scmp.eq.s32.totalorder %s20, 1
    %p211 = por %p209, %p210
    %p212 = scmp.ne.s32.totalorder %s203, %s204
    %p213 = scmp.eq.s32.totalorder %s20, 0
    %p214 = por %p212, %p213
    %p215 = scmp.ne.s32.totalorder %s203, %s204
    %p216 = scmp.eq.s32.totalorder %s21, 1
    %p217 = por %p215, %p216
    %p219 = scmp.ne.s32.totalorder %s204, %s218
    %p220 = scmp.eq.s32.totalorder %s21, 0
    %p221 = por %p219, %p220
    %s222 = ssub.s32 %s15, %s22
    %p223 = scmp.eq.s32.totalorder %s222, 0
    %s225 = sadd.s32 %s224, 1
    %s226 = scalar_select %p223, %s224, %s225
    %p229 = pneg %p223
    %p230 = scmp.eq.s32.totalorder %s15, 1
    %p231 = por %p229, %p230
    %p232 = scmp.ne.s32.totalorder %s224, %s227
    %p233 = scmp.eq.s32.totalorder %s15, 0
    %p234 = por %p232, %p233
    %p235 = scmp.ne.s32.totalorder %s224, %s227
    %p236 = scmp.eq.s32.totalorder %s20, 1
    %p237 = por %p235, %p236
    %p238 = scmp.ne.s32.totalorder %s227, %s228
    %p239 = scmp.eq.s32.totalorder %s20, 0
    %p240 = por %p238, %p239
    %p241 = scmp.ne.s32.totalorder %s227, %s228
    %p242 = scmp.eq.s32.totalorder %s21, 1
    %p243 = por %p241, %p242
    %p245 = scmp.ne.s32.totalorder %s228, %s244
    %p246 = scmp.eq.s32.totalorder %s21, 0
    %p247 = por %p245, %p246
    %p248 = scmp.le.s32.totalorder 1, %s15
    %p249 = scmp.lt.s32.totalorder %s15, 3
    %p250 = pnand %p248, %p249
    %p251 = pneg %p250
    // Predicated region
    $region9: #{generator_forward.1} parent=5 // pred_check
      _
    $region10: #{generator_forward.1} parent=5 // pred_check_branch
      %253 = sbr.rel (%p250) target = $region12
    $region11: #{generator_forward.1} parent=5 // pred_region
      %s254 = ssub.s32 %s15, 1
      // Predicated region
      $region13: #{generator_forward.1} parent=11 // pred_check
        %p255 = pneg %p88
      $region14: #{generator_forward.1} parent=11 // pred_check_branch
        %257 = sbr.rel (%p255) target = $region16
      $region15: #{generator_forward.1} parent=11 // pred_region
        _
      $region16: #{generator_forward.1} parent=11 // pred_fallthru
        _
      // Predicated region
      $region17: #{generator_forward.1} parent=11 // pred_check
        %p258 = pneg %p109
      $region18: #{generator_forward.1} parent=11 // pred_check_branch
        %260 = sbr.rel (%p258) target = $region20
      $region19: #{generator_forward.1} parent=11 // pred_region
        _
      $region20: #{generator_forward.1} parent=11 // pred_fallthru
        _
      // Predicated region
      $region21: #{generator_forward.1} parent=11 // pred_check
        %p261 = pneg %p130
      $region22: #{generator_forward.1} parent=11 // pred_check_branch
        %263 = sbr.rel (%p261) target = $region24
      $region23: #{generator_forward.1} parent=11 // pred_region
        _
      $region24: #{generator_forward.1} parent=11 // pred_fallthru
        _
      // Predicated region
      $region25: #{generator_forward.1} parent=11 // pred_check
        %p264 = pneg %p151
      $region26: #{generator_forward.1} parent=11 // pred_check_branch
        %266 = sbr.rel (%p264) target = $region28
      $region27: #{generator_forward.1} parent=11 // pred_region
        _
      $region28: #{generator_forward.1} parent=11 // pred_fallthru
        _
      // Predicated region
      $region29: #{generator_forward.1} parent=11 // pred_check
        %p267 = pneg %p172
      $region30: #{generator_forward.1} parent=11 // pred_check_branch
        %269 = sbr.rel (%p267) target = $region32
      $region31: #{generator_forward.1} parent=11 // pred_region
        _
      $region32: #{generator_forward.1} parent=11 // pred_fallthru
        _
      // Predicated region
      $region33: #{generator_forward.1} parent=11 // pred_check
        %p270 = pneg %p193
      $region34: #{generator_forward.1} parent=11 // pred_check_branch
        %272 = sbr.rel (%p270) target = $region36
      $region35: #{generator_forward.1} parent=11 // pred_region
        _
      $region36: #{generator_forward.1} parent=11 // pred_fallthru
        _
      // Predicated region
      $region37: #{generator_forward.1} parent=11 // pred_check
        %p273 = pneg %p214
      $region38: #{generator_forward.1} parent=11 // pred_check_branch
        %275 = sbr.rel (%p273) target = $region40
      $region39: #{generator_forward.1} parent=11 // pred_region
        _
      $region40: #{generator_forward.1} parent=11 // pred_fallthru
        _
    $region12: #{generator_forward.1} parent=5 // pred_fallthru
      _
    %p276 = scmp.lt.s32.totalorder %s15, 2
    // Predicated region
    $region41: #{generator_forward.1} parent=5 // pred_check
      %p277 = pneg %p276
    $region42: #{generator_forward.1} parent=5 // pred_check_branch
      %279 = sbr.rel (%p277) target = $region44
    $region43: #{generator_forward.1} parent=5 // pred_region
      // Predicated region
      $region45: #{generator_forward.1} parent=43 // pred_check
        %p280 = pneg %p35
      $region46: #{generator_forward.1} parent=43 // pred_check_branch
        %282 = sbr.rel (%p280) target = $region48
      $region47: #{generator_forward.1} parent=43 // pred_region
        %s283 = smul.u32 16, %s15
        %p284 = scmp.lt.s32.totalorder %s283, 31
        %s285 = scalar_select %p284, %s283, 31
        %s286 = smul.addr %s285, 4
        %s287 = scalar_lea.vmem %s0, %s286
        %s288 = smul.u32 16, %s15
      $region48: #{generator_forward.1} parent=43 // pred_fallthru
        _
      // Predicated region
      $region49: #{generator_forward.1} parent=43 // pred_check
        %p289 = pneg %p61
      $region50: #{generator_forward.1} parent=43 // pred_check_branch
        %291 = sbr.rel (%p289) target = $region52
      $region51: #{generator_forward.1} parent=43 // pred_region
        %s292 = smul.u32 16, %s15
        %p293 = scmp.lt.s32.totalorder %s292, 31
        %s294 = scalar_select %p293, %s292, 31
        %s295 = smul.addr %s294, 4
        %s296 = scalar_lea.vmem %s1, %s295
        %s297 = smul.u32 16, %s15
      $region52: #{generator_forward.1} parent=43 // pred_fallthru
        _
    $region44: #{generator_forward.1} parent=5 // pred_fallthru
      _
    %p298 = scmp.le.s32.totalorder 1, %s15
    %p299 = scmp.lt.s32.totalorder %s15, 3
    %p300 = pnand %p298, %p299
    %p301 = pneg %p300
    // Predicated region
    $region53: #{generator_forward.1} parent=5 // pred_check
      _
    $region54: #{generator_forward.1} parent=5 // pred_check_branch
      %303 = sbr.rel (%p300) target = $region56
    $region55: #{generator_forward.1} parent=5 // pred_region
      %s304 = ssub.s32 %s15, 1
      %s305 = smul.u32 16, %s20
      %p306 = scmp.lt.s32.totalorder %s305, 31
      %s307 = scalar_select %p306, %s305, 31
      %s308 = smul.addr %s307, 4
      %s309 = scalar_lea.vmem %s0, %s308
      %p310 = pneg %p41
      %p311 = pneg %p38
      %s312 = smul.u32 16, %s20
      %p313 = scmp.lt.s32.totalorder %s312, 31
      %s314 = scalar_select %p313, %s312, 31
      %s315 = smul.addr %s314, 4
      %s316 = scalar_lea.vmem %s1, %s315
      %p317 = pneg %p67
      %p318 = pneg %p64
      %p319 = pneg %p88
      %p320 = pneg %p85
      %p321 = pneg %p109
      %p322 = pneg %p106
      %p323 = pneg %p130
      %p324 = pneg %p127
      %p325 = pneg %p151
      %p326 = pneg %p148
      %p327 = pneg %p172
      %p328 = pneg %p169
      %p329 = pneg %p193
      %p330 = pneg %p190
      %p331 = pneg %p214
      %p332 = pneg %p211
      %p333 = pneg %p240
      %p334 = pneg %p237
      %s335 = smul.u32 16, %s20
      %p336 = scmp.lt.s32.totalorder %s335, 31
      %s337 = scalar_select %p336, %s335, 31
      %s338 = smul.addr %s337, 2
      %s339 = smul.addr %s338, 4
      %s340 = scalar_lea.vmem %s9, %s339
      %s341 = smul.u32 16, %s20
      %p342 = scmp.lt.s32.totalorder %s341, 31
      %s343 = scalar_select %p342, %s341, 31
      %s344 = smul.addr %s343, 4
      %s345 = scalar_lea.vmem %s0, %s344
      %s346 = smul.u32 16, %s20
      %s347 = smul.u32 16, %s20
      %p348 = scmp.lt.s32.totalorder %s347, 31
      %s349 = scalar_select %p348, %s347, 31
      %s350 = smul.addr %s349, 4
      %s351 = scalar_lea.vmem %s1, %s350
      %s352 = smul.u32 16, %s20
      %s353 = smul.u32 16, %s20
      %p354 = scmp.lt.s32.totalorder %s353, 31
      %s355 = scalar_select %p354, %s353, 31
      %s356 = smul.addr %s355, 2
      %s357 = smul.addr %s356, 4
      %s358 = scalar_lea.vmem %s9, %s357
      %s359 = smul.u32 16, %s20
      %v361 = vld [vmem:[%s345] sm:$0xf]
      %v362 = vld [vmem:[%s345 + $0x4] sm:$0xf]
      %v363 = vld [vmem:[%s345 + $0x8] sm:$0xf]
      %v364 = vld [vmem:[%s345 + $0xc] sm:$0xf]
      %v365 = vld [vmem:[%s345 + $0x10] sm:$0xf]
      %v366 = vld [vmem:[%s345 + $0x14] sm:$0xf]
      %v367 = vld [vmem:[%s345 + $0x18] sm:$0xf]
      %v368 = vld [vmem:[%s345 + $0x1c] sm:$0xf]
      %v369 = vld [vmem:[%s345 + $0x20] sm:$0xf]
      %v370 = vld [vmem:[%s345 + $0x24] sm:$0xf]
      %v371 = vld [vmem:[%s345 + $0x28] sm:$0xf]
      %v372 = vld [vmem:[%s345 + $0x2c] sm:$0xf]
      %v373 = vld [vmem:[%s345 + $0x30] sm:$0xf]
      %v374 = vld [vmem:[%s345 + $0x34] sm:$0xf]
      %v375 = vld [vmem:[%s345 + $0x38] sm:$0xf]
      %v376 = vld [vmem:[%s345 + $0x3c] sm:$0xf]
      %v377 = vld [vmem:[%s351] sm:$0xf]
      %v378 = vld [vmem:[%s351 + $0x4] sm:$0xf]
      %v379 = vld [vmem:[%s351 + $0x8] sm:$0xf]
      %v380 = vld [vmem:[%s351 + $0xc] sm:$0xf]
      %v381 = vld [vmem:[%s351 + $0x10] sm:$0xf]
      %v382 = vld [vmem:[%s351 + $0x14] sm:$0xf]
      %v383 = vld [vmem:[%s351 + $0x18] sm:$0xf]
      %v384 = vld [vmem:[%s351 + $0x1c] sm:$0xf]
      %v385 = vld [vmem:[%s351 + $0x20] sm:$0xf]
      %v386 = vld [vmem:[%s351 + $0x24] sm:$0xf]
      %v387 = vld [vmem:[%s351 + $0x28] sm:$0xf]
      %v388 = vld [vmem:[%s351 + $0x2c] sm:$0xf]
      %v389 = vld [vmem:[%s351 + $0x30] sm:$0xf]
      %v390 = vld [vmem:[%s351 + $0x34] sm:$0xf]
      %v391 = vld [vmem:[%s351 + $0x38] sm:$0xf]
      %v392 = vld [vmem:[%s351 + $0x3c] sm:$0xf]
      %v393 = vld [vmem:[%s2] sm:$0xf]
      %v394 = vld [vmem:[%s2 + $0x4] sm:$0xf]
      %v395 = vld [vmem:[%s2 + $0x8] sm:$0xf]
      %v396 = vld [vmem:[%s2 + $0xc] sm:$0xf]
      %v397 = vld [vmem:[%s2 + $0x10] sm:$0xf]
      %v398 = vld [vmem:[%s2 + $0x14] sm:$0xf]
      %v399 = vld [vmem:[%s3] sm:$0x1]
      %v401 = vlaneseq
      %v402 = vshrl.u32 %v401, 7
      %v403 = vsub.s32 0, %v402
      %v404 = vrot.slane %v399, %v403
      %v422 = vunpack.c.l.b16 %v361
      %v423 = vunpack.c.l.b16 %v362
      %v424 = vunpack.c.l.b16 %v363
      %v425 = vunpack.c.l.b16 %v364
      %v426 = vunpack.c.l.b16 %v365
      %v427 = vunpack.c.l.b16 %v366
      %v428 = vunpack.c.l.b16 %v367
      %v429 = vunpack.c.l.b16 %v368
      %v430 = vunpack.c.l.b16 %v369
      %v431 = vunpack.c.l.b16 %v370
      %v432 = vunpack.c.l.b16 %v371
      %v433 = vunpack.c.l.b16 %v372
      %v434 = vunpack.c.l.b16 %v373
      %v435 = vunpack.c.l.b16 %v374
      %v436 = vunpack.c.l.b16 %v375
      %v437 = vunpack.c.l.b16 %v376
      %v438 = vpack.c.b16 %v423, %v422
      %v439 = vpack.c.b16 %v425, %v424
      %v440 = vpack.c.b16 %v427, %v426
      %v441 = vpack.c.b16 %v429, %v428
      %v442 = vpack.c.b16 %v431, %v430
      %v443 = vpack.c.b16 %v433, %v432
      %v444 = vpack.c.b16 %v435, %v434
      %v445 = vpack.c.b16 %v437, %v436
      %v452 = vunpack.c.l.b16 %v393
      %v453 = vunpack.c.l.b16 %v394
      %v454 = vunpack.c.l.b16 %v395
      %v455 = vunpack.c.l.b16 %v396
      %v456 = vunpack.c.l.b16 %v397
      %v457 = vunpack.c.l.b16 %v398
      %v458 = vpack.c.b16 %v453, %v452
      %v459 = vpack.c.b16 %v455, %v454
      %v460 = vpack.c.b16 %v457, %v456
      %vm464 = vcmask 392192
      %v466 = vsel %vm464, %v438, 0
      %v469 = vsel %vm464, %v439, 0
      %v472 = vsel %vm464, %v440, 0
      %v475 = vsel %vm464, %v441, 0
      %v478 = vsel %vm464, %v442, 0
      %v481 = vsel %vm464, %v443, 0
      %v484 = vsel %vm464, %v444, 0
      %v487 = vsel %vm464, %v445, 0
      %489 = vmatprep.subr.bf16.mxu0 0
      %490 = vmatpush1.bf16.msra.mxu0 0
      %491 = vmatprep.subr.bf16.mxu0 0
      %492 = vmatpush1.bf16.msra.mxu0 0
      %493 = vmatprep.subr.bf16.mxu0 0
      %494 = vmatpush1.bf16.msra.mxu0 0
      %495 = vmatprep.subr.bf16.mxu0 0
      %496 = vmatpush1.bf16.msra.mxu0 0
      %497 = vmatprep.subr.bf16.mxu0 0
      %498 = vmatpush1.bf16.msra.mxu0 0
      %499 = vmatprep.subr.bf16.mxu0 0
      %500 = vmatpush1.bf16.msra.mxu0 %v460
      %501 = vmatprep.subr.bf16.mxu0 0
      %502 = vmatpush1.bf16.msra.mxu0 %v459
      %503 = vmatprep.subr.bf16.mxu0 0
      %504 = vmatpush1.bf16.msra.mxu0 %v458
      %505 = vmatprep.subr.bf16.mxu0 0
      %506 = vmatpush2.bf16.msra.mxu0 0
      %507 = vmatprep.subr.bf16.mxu0 0
      %508 = vmatpush2.bf16.msra.mxu0 0
      %509 = vmatprep.subr.bf16.mxu0 0
      %510 = vmatpush2.bf16.msra.mxu0 0
      %511 = vmatprep.subr.bf16.mxu0 0
      %512 = vmatpush2.bf16.msra.mxu0 0
      %513 = vmatprep.subr.bf16.mxu0 0
      %514 = vmatpush2.bf16.msra.mxu0 0
      %515 = vmatprep.subr.bf16.mxu0 0
      %516 = vmatpush2.bf16.msra.mxu0 0
      %517 = vmatprep.subr.bf16.mxu0 0
      %518 = vmatpush2.bf16.msra.mxu0 0
      %519 = vmatprep.subr.bf16.mxu0 0
      %520 = vmatpush2.bf16.msra.mxu0 0
      %521 = vmatprep.mubr.bf16.mxu0 0
      %522 = vmatmul.mubr.bf16.gmra.mxu0 %v466
      %v523 = vpop.f32.mrf.mxu0
      %v524 = vadd.f32 %v404, %v523
      %v525 = vpop.f32.mrf.mxu0
      %v526 = vpop.f32.mrf.mxu0
      %v527 = vadd.f32 %v404, %v526
      %v528 = vpop.f32.mrf.mxu0
      %529 = vmatprep.mubr.bf16.mxu0 0
      %530 = vmatmul.mubr.bf16.gmra.mxu0 %v469
      %v531 = vpop.f32.mrf.mxu0
      %v532 = vadd.f32 %v404, %v531
      %v533 = vpop.f32.mrf.mxu0
      %v534 = vpop.f32.mrf.mxu0
      %v535 = vadd.f32 %v404, %v534
      %v536 = vpop.f32.mrf.mxu0
      %537 = vmatprep.mubr.bf16.mxu0 0
      %538 = vmatmul.mubr.bf16.gmra.mxu0 %v472
      %v539 = vpop.f32.mrf.mxu0
      %v540 = vadd.f32 %v404, %v539
      %v541 = vpop.f32.mrf.mxu0
      %v542 = vpop.f32.mrf.mxu0
      %v543 = vadd.f32 %v404, %v542
      %v544 = vpop.f32.mrf.mxu0
      %545 = vmatprep.mubr.bf16.mxu0 0
      %546 = vmatmul.mubr.bf16.gmra.mxu0 %v475
      %v547 = vpop.f32.mrf.mxu0
      %v548 = vadd.f32 %v404, %v547
      %v549 = vpop.f32.mrf.mxu0
      %v550 = vpop.f32.mrf.mxu0
      %v551 = vadd.f32 %v404, %v550
      %v552 = vpop.f32.mrf.mxu0
      %553 = vmatprep.mubr.bf16.mxu0 0
      %554 = vmatmul.mubr.bf16.gmra.mxu0 %v478
      %v555 = vpop.f32.mrf.mxu0
      %v556 = vadd.f32 %v404, %v555
      %v557 = vpop.f32.mrf.mxu0
      %v558 = vpop.f32.mrf.mxu0
      %v559 = vadd.f32 %v404, %v558
      %v560 = vpop.f32.mrf.mxu0
      %561 = vmatprep.mubr.bf16.mxu0 0
      %562 = vmatmul.mubr.bf16.gmra.mxu0 %v481
      %v563 = vpop.f32.mrf.mxu0
      %v564 = vadd.f32 %v404, %v563
      %v565 = vpop.f32.mrf.mxu0
      %v566 = vpop.f32.mrf.mxu0
      %v567 = vadd.f32 %v404, %v566
      %v568 = vpop.f32.mrf.mxu0
      %569 = vmatprep.mubr.bf16.mxu0 0
      %570 = vmatmul.mubr.bf16.gmra.mxu0 %v484
      %v571 = vpop.f32.mrf.mxu0
      %v572 = vadd.f32 %v404, %v571
      %v573 = vpop.f32.mrf.mxu0
      %v574 = vpop.f32.mrf.mxu0
      %v575 = vadd.f32 %v404, %v574
      %v576 = vpop.f32.mrf.mxu0
      %577 = vmatprep.mubr.bf16.mxu0 0
      %578 = vmatmul.mubr.bf16.gmra.mxu0 %v487
      %v579 = vpop.f32.mrf.mxu0
      %v580 = vadd.f32 %v404, %v579
      %v581 = vpop.f32.mrf.mxu0
      %v582 = vpop.f32.mrf.mxu0
      %v583 = vadd.f32 %v404, %v582
      %v584 = vpop.f32.mrf.mxu0
      %585 = vdwg.mxu0
      %v586 = vmax.f32 %v524, 0.0
      %v587 = vmax.f32 %v527, 0.0
      %v588 = vmax.f32 %v532, 0.0
      %v589 = vmax.f32 %v535, 0.0
      %v590 = vmax.f32 %v540, 0.0
      %v591 = vmax.f32 %v543, 0.0
      %v592 = vmax.f32 %v548, 0.0
      %v593 = vmax.f32 %v551, 0.0
      %v594 = vmax.f32 %v556, 0.0
      %v595 = vmax.f32 %v559, 0.0
      %v596 = vmax.f32 %v564, 0.0
      %v597 = vmax.f32 %v567, 0.0
      %v598 = vmax.f32 %v572, 0.0
      %v599 = vmax.f32 %v575, 0.0
      %v600 = vmax.f32 %v580, 0.0
      %v601 = vmax.f32 %v583, 0.0
      %v602 = vpack.c.bf16 %v587, %v586
      %v603 = vpack.c.bf16 %v589, %v588
      %v604 = vpack.c.bf16 %v591, %v590
      %v605 = vpack.c.bf16 %v593, %v592
      %v606 = vpack.c.bf16 %v595, %v594
      %v607 = vpack.c.bf16 %v597, %v596
      %v608 = vpack.c.bf16 %v599, %v598
      %v609 = vpack.c.bf16 %v601, %v600
      %v610 = vld [vmem:[%s4] sm:$0xf]
      %v611 = vld [vmem:[%s4 + $0x4] sm:$0xf]
      %v612 = vld [vmem:[%s4 + $0x8] sm:$0xf]
      %v613 = vld [vmem:[%s4 + $0xc] sm:$0xf]
      %v614 = vld [vmem:[%s4 + $0x10] sm:$0xf]
      %v615 = vld [vmem:[%s4 + $0x14] sm:$0xf]
      %v616 = vld [vmem:[%s4 + $0x18] sm:$0xf]
      %v617 = vld [vmem:[%s4 + $0x1c] sm:$0xf]
      %v618 = vld [vmem:[%s4 + $0x20] sm:$0xf]
      %v619 = vld [vmem:[%s4 + $0x24] sm:$0xf]
      %v620 = vld [vmem:[%s4 + $0x28] sm:$0xf]
      %v621 = vld [vmem:[%s4 + $0x2c] sm:$0xf]
      %v622 = vld [vmem:[%s4 + $0x30] sm:$0xf]
      %v623 = vld [vmem:[%s4 + $0x34] sm:$0xf]
      %v624 = vld [vmem:[%s4 + $0x38] sm:$0xf]
      %v625 = vld [vmem:[%s4 + $0x3c] sm:$0xf]
      %v626 = vld [vmem:[%s5] sm:$0xf]
      %v627 = vld [vmem:[%s5 + $0x4] sm:$0xf]
      %v644 = vunpack.c.l.b16 %v377
      %v645 = vunpack.c.l.b16 %v378
      %v646 = vunpack.c.l.b16 %v379
      %v647 = vunpack.c.l.b16 %v380
      %v648 = vunpack.c.l.b16 %v381
      %v649 = vunpack.c.l.b16 %v382
      %v650 = vunpack.c.l.b16 %v383
      %v651 = vunpack.c.l.b16 %v384
      %v652 = vunpack.c.l.b16 %v385
      %v653 = vunpack.c.l.b16 %v386
      %v654 = vunpack.c.l.b16 %v387
      %v655 = vunpack.c.l.b16 %v388
      %v656 = vunpack.c.l.b16 %v389
      %v657 = vunpack.c.l.b16 %v390
      %v658 = vunpack.c.l.b16 %v391
      %v659 = vunpack.c.l.b16 %v392
      %v660 = vpack.c.b16 %v645, %v644
      %v661 = vpack.c.b16 %v647, %v646
      %v662 = vpack.c.b16 %v649, %v648
      %v663 = vpack.c.b16 %v651, %v650
      %v664 = vpack.c.b16 %v653, %v652
      %v665 = vpack.c.b16 %v655, %v654
      %v666 = vpack.c.b16 %v657, %v656
      %v667 = vpack.c.b16 %v659, %v658
      %v670 = vunpack.c.l.b16 %v626
      %v671 = vunpack.c.l.b16 %v627
      %v672 = vpack.c.b16 %v671, %v670
      %vm674 = vcmask 130048
      %v676 = vsel %vm674, %v660, 0
      %v679 = vsel %vm674, %v661, 0
      %v682 = vsel %vm674, %v662, 0
      %v685 = vsel %vm674, %v663, 0
      %v688 = vsel %vm674, %v664, 0
      %v691 = vsel %vm674, %v665, 0
      %v694 = vsel %vm674, %v666, 0
      %v697 = vsel %vm674, %v667, 0
      %699 = vmatprep.subr.bf16.mxu0 0
      %700 = vmatpush1.bf16.msra.mxu0 0
      %701 = vmatprep.subr.bf16.mxu0 0
      %702 = vmatpush1.bf16.msra.mxu0 0
      %703 = vmatprep.subr.bf16.mxu0 0
      %704 = vmatpush1.bf16.msra.mxu0 0
      %705 = vmatprep.subr.bf16.mxu0 0
      %706 = vmatpush1.bf16.msra.mxu0 0
      %707 = vmatprep.subr.bf16.mxu0 0
      %708 = vmatpush1.bf16.msra.mxu0 0
      %709 = vmatprep.subr.bf16.mxu0 0
      %710 = vmatpush1.bf16.msra.mxu0 0
      %711 = vmatprep.subr.bf16.mxu0 0
      %712 = vmatpush1.bf16.msra.mxu0 0
      %713 = vmatprep.subr.bf16.mxu0 0
      %714 = vmatpush1.bf16.msra.mxu0 %v672
      %715 = vmatprep.subr.bf16.mxu0 0
      %716 = vmatpush2.bf16.msra.mxu0 0
      %717 = vmatprep.subr.bf16.mxu0 0
      %718 = vmatpush2.bf16.msra.mxu0 0
      %719 = vmatprep.subr.bf16.mxu0 0
      %720 = vmatpush2.bf16.msra.mxu0 0
      %721 = vmatprep.subr.bf16.mxu0 0
      %722 = vmatpush2.bf16.msra.mxu0 0
      %723 = vmatprep.subr.bf16.mxu0 0
      %724 = vmatpush2.bf16.msra.mxu0 0
      %725 = vmatprep.subr.bf16.mxu0 0
      %726 = vmatpush2.bf16.msra.mxu0 0
      %727 = vmatprep.subr.bf16.mxu0 0
      %728 = vmatpush2.bf16.msra.mxu0 0
      %729 = vmatprep.subr.bf16.mxu0 0
      %730 = vmatpush2.bf16.msra.mxu0 0
      %731 = vmatprep.mubr.bf16.mxu0 0
      %732 = vmatmul.mubr.bf16.gmra.mxu0 %v676
      %v733 = vpop.f32.mrf.mxu0
      %v734 = vadd.f32 0.0, %v733
      %v735 = vpop.f32.mrf.mxu0
      %v736 = vpop.f32.mrf.mxu0
      %v737 = vadd.f32 0.0, %v736
      %v738 = vpop.f32.mrf.mxu0
      %739 = vmatprep.mubr.bf16.mxu0 0
      %740 = vmatmul.mubr.bf16.gmra.mxu0 %v679
      %v741 = vpop.f32.mrf.mxu0
      %v742 = vadd.f32 0.0, %v741
      %v743 = vpop.f32.mrf.mxu0
      %v744 = vpop.f32.mrf.mxu0
      %v745 = vadd.f32 0.0, %v744
      %v746 = vpop.f32.mrf.mxu0
      %747 = vmatprep.mubr.bf16.mxu0 0
      %748 = vmatmul.mubr.bf16.gmra.mxu0 %v682
      %v749 = vpop.f32.mrf.mxu0
      %v750 = vadd.f32 0.0, %v749
      %v751 = vpop.f32.mrf.mxu0
      %v752 = vpop.f32.mrf.mxu0
      %v753 = vadd.f32 0.0, %v752
      %v754 = vpop.f32.mrf.mxu0
      %755 = vmatprep.mubr.bf16.mxu0 0
      %756 = vmatmul.mubr.bf16.gmra.mxu0 %v685
      %v757 = vpop.f32.mrf.mxu0
      %v758 = vadd.f32 0.0, %v757
      %v759 = vpop.f32.mrf.mxu0
      %v760 = vpop.f32.mrf.mxu0
      %v761 = vadd.f32 0.0, %v760
      %v762 = vpop.f32.mrf.mxu0
      %763 = vmatprep.mubr.bf16.mxu0 0
      %764 = vmatmul.mubr.bf16.gmra.mxu0 %v688
      %v765 = vpop.f32.mrf.mxu0
      %v766 = vadd.f32 0.0, %v765
      %v767 = vpop.f32.mrf.mxu0
      %v768 = vpop.f32.mrf.mxu0
      %v769 = vadd.f32 0.0, %v768
      %v770 = vpop.f32.mrf.mxu0
      %771 = vmatprep.mubr.bf16.mxu0 0
      %772 = vmatmul.mubr.bf16.gmra.mxu0 %v691
      %v773 = vpop.f32.mrf.mxu0
      %v774 = vadd.f32 0.0, %v773
      %v775 = vpop.f32.mrf.mxu0
      %v776 = vpop.f32.mrf.mxu0
      %v777 = vadd.f32 0.0, %v776
      %v778 = vpop.f32.mrf.mxu0
      %779 = vmatprep.mubr.bf16.mxu0 0
      %780 = vmatmul.mubr.bf16.gmra.mxu0 %v694
      %v781 = vpop.f32.mrf.mxu0
      %v782 = vadd.f32 0.0, %v781
      %v783 = vpop.f32.mrf.mxu0
      %v784 = vpop.f32.mrf.mxu0
      %v785 = vadd.f32 0.0, %v784
      %v786 = vpop.f32.mrf.mxu0
      %787 = vmatprep.mubr.bf16.mxu0 0
      %788 = vmatmul.mubr.bf16.gmra.mxu0 %v697
      %v789 = vpop.f32.mrf.mxu0
      %v790 = vadd.f32 0.0, %v789
      %v791 = vpop.f32.mrf.mxu0
      %v792 = vpop.f32.mrf.mxu0
      %v793 = vadd.f32 0.0, %v792
      %v794 = vpop.f32.mrf.mxu0
      %795 = vdwg.mxu0
      %v812 = vunpack.c.l.b16 %v610
      %v813 = vunpack.c.l.b16 %v611
      %v814 = vunpack.c.l.b16 %v612
      %v815 = vunpack.c.l.b16 %v613
      %v816 = vunpack.c.l.b16 %v614
      %v817 = vunpack.c.l.b16 %v615
      %v818 = vunpack.c.l.b16 %v616
      %v819 = vunpack.c.l.b16 %v617
      %v820 = vunpack.c.l.b16 %v618
      %v821 = vunpack.c.l.b16 %v619
      %v822 = vunpack.c.l.b16 %v620
      %v823 = vunpack.c.l.b16 %v621
      %v824 = vunpack.c.l.b16 %v622
      %v825 = vunpack.c.l.b16 %v623
      %v826 = vunpack.c.l.b16 %v624
      %v827 = vunpack.c.l.b16 %v625
      %v828 = vpack.c.b16 %v813, %v812
      %v829 = vpack.c.b16 %v815, %v814
      %v830 = vpack.c.b16 %v817, %v816
      %v831 = vpack.c.b16 %v819, %v818
      %v832 = vpack.c.b16 %v821, %v820
      %v833 = vpack.c.b16 %v823, %v822
      %v834 = vpack.c.b16 %v825, %v824
      %v835 = vpack.c.b16 %v827, %v826
      %844 = vmatprep.subr.bf16.mxu0 0
      %845 = vmatpush1.bf16.msra.mxu0 %v835
      %846 = vmatprep.subr.bf16.mxu0 0
      %847 = vmatpush1.bf16.msra.mxu0 %v834
      %848 = vmatprep.subr.bf16.mxu0 0
      %849 = vmatpush1.bf16.msra.mxu0 %v833
      %850 = vmatprep.subr.bf16.mxu0 0
      %851 = vmatpush1.bf16.msra.mxu0 %v832
      %852 = vmatprep.subr.bf16.mxu0 0
      %853 = vmatpush1.bf16.msra.mxu0 %v831
      %854 = vmatprep.subr.bf16.mxu0 0
      %855 = vmatpush1.bf16.msra.mxu0 %v830
      %856 = vmatprep.subr.bf16.mxu0 0
      %857 = vmatpush1.bf16.msra.mxu0 %v829
      %858 = vmatprep.subr.bf16.mxu0 0
      %859 = vmatpush1.bf16.msra.mxu0 %v828
      %860 = vmatprep.subr.bf16.mxu0 0
      %861 = vmatpush2.bf16.msra.mxu0 0
      %862 = vmatprep.subr.bf16.mxu0 0
      %863 = vmatpush2.bf16.msra.mxu0 0
      %864 = vmatprep.subr.bf16.mxu0 0
      %865 = vmatpush2.bf16.msra.mxu0 0
      %866 = vmatprep.subr.bf16.mxu0 0
      %867 = vmatpush2.bf16.msra.mxu0 0
      %868 = vmatprep.subr.bf16.mxu0 0
      %869 = vmatpush2.bf16.msra.mxu0 0
      %870 = vmatprep.subr.bf16.mxu0 0
      %871 = vmatpush2.bf16.msra.mxu0 0
      %872 = vmatprep.subr.bf16.mxu0 0
      %873 = vmatpush2.bf16.msra.mxu0 0
      %874 = vmatprep.subr.bf16.mxu0 0
      %875 = vmatpush2.bf16.msra.mxu0 0
      %876 = vmatprep.mubr.bf16.mxu0 0
      %877 = vmatmul.mubr.bf16.gmra.mxu0 %v602
      %v878 = vpop.f32.mrf.mxu0
      %v879 = vadd.f32 %v734, %v878
      %v880 = vpop.f32.mrf.mxu0
      %v881 = vpop.f32.mrf.mxu0
      %v882 = vadd.f32 %v737, %v881
      %v883 = vpop.f32.mrf.mxu0
      %884 = vmatprep.mubr.bf16.mxu0 0
      %885 = vmatmul.mubr.bf16.gmra.mxu0 %v603
      %v886 = vpop.f32.mrf.mxu0
      %v887 = vadd.f32 %v742, %v886
      %v888 = vpop.f32.mrf.mxu0
      %v889 = vpop.f32.mrf.mxu0
      %v890 = vadd.f32 %v745, %v889
      %v891 = vpop.f32.mrf.mxu0
      %892 = vmatprep.mubr.bf16.mxu0 0
      %893 = vmatmul.mubr.bf16.gmra.mxu0 %v604
      %v894 = vpop.f32.mrf.mxu0
      %v895 = vadd.f32 %v750, %v894
      %v896 = vpop.f32.mrf.mxu0
      %v897 = vpop.f32.mrf.mxu0
      %v898 = vadd.f32 %v753, %v897
      %v899 = vpop.f32.mrf.mxu0
      %900 = vmatprep.mubr.bf16.mxu0 0
      %901 = vmatmul.mubr.bf16.gmra.mxu0 %v605
      %v902 = vpop.f32.mrf.mxu0
      %v903 = vadd.f32 %v758, %v902
      %v904 = vpop.f32.mrf.mxu0
      %v905 = vpop.f32.mrf.mxu0
      %v906 = vadd.f32 %v761, %v905
      %v907 = vpop.f32.mrf.mxu0
      %908 = vmatprep.mubr.bf16.mxu0 0
      %909 = vmatmul.mubr.bf16.gmra.mxu0 %v606
      %v910 = vpop.f32.mrf.mxu0
      %v911 = vadd.f32 %v766, %v910
      %v912 = vpop.f32.mrf.mxu0
      %v913 = vpop.f32.mrf.mxu0
      %v914 = vadd.f32 %v769, %v913
      %v915 = vpop.f32.mrf.mxu0
      %916 = vmatprep.mubr.bf16.mxu0 0
      %917 = vmatmul.mubr.bf16.gmra.mxu0 %v607
      %v918 = vpop.f32.mrf.mxu0
      %v919 = vadd.f32 %v774, %v918
      %v920 = vpop.f32.mrf.mxu0
      %v921 = vpop.f32.mrf.mxu0
      %v922 = vadd.f32 %v777, %v921
      %v923 = vpop.f32.mrf.mxu0
      %924 = vmatprep.mubr.bf16.mxu0 0
      %925 = vmatmul.mubr.bf16.gmra.mxu0 %v608
      %v926 = vpop.f32.mrf.mxu0
      %v927 = vadd.f32 %v782, %v926
      %v928 = vpop.f32.mrf.mxu0
      %v929 = vpop.f32.mrf.mxu0
      %v930 = vadd.f32 %v785, %v929
      %v931 = vpop.f32.mrf.mxu0
      %932 = vmatprep.mubr.bf16.mxu0 0
      %933 = vmatmul.mubr.bf16.gmra.mxu0 %v609
      %v934 = vpop.f32.mrf.mxu0
      %v935 = vadd.f32 %v790, %v934
      %v936 = vpop.f32.mrf.mxu0
      %v937 = vpop.f32.mrf.mxu0
      %v938 = vadd.f32 %v793, %v937
      %v939 = vpop.f32.mrf.mxu0
      %940 = vdwg.mxu0
      %v941 = vld [vmem:[%s6] sm:$0x1]
      %v943 = vlaneseq
      %v944 = vshrl.u32 %v943, 7
      %v945 = vsub.s32 0, %v944
      %v946 = vrot.slane %v941, %v945
      %v948 = vadd.f32 %v879, %v946
      %v949 = vadd.f32 %v882, %v946
      %v950 = vadd.f32 %v887, %v946
      %v951 = vadd.f32 %v890, %v946
      %v952 = vadd.f32 %v895, %v946
      %v953 = vadd.f32 %v898, %v946
      %v954 = vadd.f32 %v903, %v946
      %v955 = vadd.f32 %v906, %v946
      %v956 = vadd.f32 %v911, %v946
      %v957 = vadd.f32 %v914, %v946
      %v958 = vadd.f32 %v919, %v946
      %v959 = vadd.f32 %v922, %v946
      %v960 = vadd.f32 %v927, %v946
      %v961 = vadd.f32 %v930, %v946
      %v962 = vadd.f32 %v935, %v946
      %v963 = vadd.f32 %v938, %v946
      %v964 = vmax.f32 %v948, 0.0
      %v965 = vmax.f32 %v949, 0.0
      %v966 = vmax.f32 %v950, 0.0
      %v967 = vmax.f32 %v951, 0.0
      %v968 = vmax.f32 %v952, 0.0
      %v969 = vmax.f32 %v953, 0.0
      %v970 = vmax.f32 %v954, 0.0
      %v971 = vmax.f32 %v955, 0.0
      %v972 = vmax.f32 %v956, 0.0
      %v973 = vmax.f32 %v957, 0.0
      %v974 = vmax.f32 %v958, 0.0
      %v975 = vmax.f32 %v959, 0.0
      %v976 = vmax.f32 %v960, 0.0
      %v977 = vmax.f32 %v961, 0.0
      %v978 = vmax.f32 %v962, 0.0
      %v979 = vmax.f32 %v963, 0.0
      %v980 = vpack.c.bf16 %v965, %v964
      %v981 = vpack.c.bf16 %v967, %v966
      %v982 = vpack.c.bf16 %v969, %v968
      %v983 = vpack.c.bf16 %v971, %v970
      %v984 = vpack.c.bf16 %v973, %v972
      %v985 = vpack.c.bf16 %v975, %v974
      %v986 = vpack.c.bf16 %v977, %v976
      %v987 = vpack.c.bf16 %v979, %v978
      %v988 = vld [vmem:[%s7] sm:$0xff]
      %v989 = vld [vmem:[%s7 + $0x8] sm:$0xff]
      %v990 = vld [vmem:[%s7 + $0x10] sm:$0xff]
      %v991 = vld [vmem:[%s7 + $0x18] sm:$0xff]
      %v992 = vld [vmem:[%s7 + $0x20] sm:$0xff]
      %v993 = vld [vmem:[%s7 + $0x28] sm:$0xff]
      %v994 = vld [vmem:[%s7 + $0x30] sm:$0xff]
      %v995 = vld [vmem:[%s7 + $0x38] sm:$0xff]
      %v996 = vld [vmem:[%s7 + $0x40] sm:$0xff]
      %v997 = vld [vmem:[%s7 + $0x48] sm:$0xff]
      %v998 = vld [vmem:[%s7 + $0x50] sm:$0xff]
      %v999 = vld [vmem:[%s7 + $0x58] sm:$0xff]
      %v1000 = vld [vmem:[%s7 + $0x60] sm:$0xff]
      %v1001 = vld [vmem:[%s7 + $0x68] sm:$0xff]
      %v1002 = vld [vmem:[%s7 + $0x70] sm:$0xff]
      %v1003 = vld [vmem:[%s7 + $0x78] sm:$0xff]
      %v1004 = vld [vmem:[%s8] sm:$0x3]
      %v1006 = vlaneseq
      %v1007 = vshrl.u32 %v1006, 7
      %v1008 = vsub.s32 0, %v1007
      %v1009 = vrot.slane %v1004, %v1008
      %v1010 = vlaneseq
      %v1011 = vshrl.u32 %v1010, 7
      %v1012 = vsub.s32 1, %v1011
      %v1013 = vrot.slane %v1004, %v1012
      %v1032 = vunpack.c.l.b16 %v988
      %v1033 = vunpack.c.h.b16 %v988
      %v1034 = vunpack.c.l.b16 %v989
      %v1035 = vunpack.c.h.b16 %v989
      %v1036 = vunpack.c.l.b16 %v990
      %v1037 = vunpack.c.h.b16 %v990
      %v1038 = vunpack.c.l.b16 %v991
      %v1039 = vunpack.c.h.b16 %v991
      %v1040 = vunpack.c.l.b16 %v992
      %v1041 = vunpack.c.h.b16 %v992
      %v1042 = vunpack.c.l.b16 %v993
      %v1043 = vunpack.c.h.b16 %v993
      %v1044 = vunpack.c.l.b16 %v994
      %v1045 = vunpack.c.h.b16 %v994
      %v1046 = vunpack.c.l.b16 %v995
      %v1047 = vunpack.c.h.b16 %v995
      %v1048 = vunpack.c.l.b16 %v996
      %v1049 = vunpack.c.h.b16 %v996
      %v1050 = vunpack.c.l.b16 %v997
      %v1051 = vunpack.c.h.b16 %v997
      %v1052 = vunpack.c.l.b16 %v998
      %v1053 = vunpack.c.h.b16 %v998
      %v1054 = vunpack.c.l.b16 %v999
      %v1055 = vunpack.c.h.b16 %v999
      %v1056 = vunpack.c.l.b16 %v1000
      %v1057 = vunpack.c.h.b16 %v1000
      %v1058 = vunpack.c.l.b16 %v1001
      %v1059 = vunpack.c.h.b16 %v1001
      %v1060 = vunpack.c.l.b16 %v1002
      %v1061 = vunpack.c.h.b16 %v1002
      %v1062 = vunpack.c.l.b16 %v1003
      %v1063 = vunpack.c.h.b16 %v1003
      %v1064 = vpack.c.b16 %v1034, %v1032
      %v1065 = vpack.c.b16 %v1035, %v1033
      %v1066 = vpack.c.b16 %v1038, %v1036
      %v1067 = vpack.c.b16 %v1039, %v1037
      %v1068 = vpack.c.b16 %v1042, %v1040
      %v1069 = vpack.c.b16 %v1043, %v1041
      %v1070 = vpack.c.b16 %v1046, %v1044
      %v1071 = vpack.c.b16 %v1047, %v1045
      %v1072 = vpack.c.b16 %v1050, %v1048
      %v1073 = vpack.c.b16 %v1051, %v1049
      %v1074 = vpack.c.b16 %v1054, %v1052
      %v1075 = vpack.c.b16 %v1055, %v1053
      %v1076 = vpack.c.b16 %v1058, %v1056
      %v1077 = vpack.c.b16 %v1059, %v1057
      %v1078 = vpack.c.b16 %v1062, %v1060
      %v1079 = vpack.c.b16 %v1063, %v1061
      %1096 = vmatprep.subr.bf16.mxu0 %v1079
      %1097 = vmatpush1.bf16.msra.mxu0 %v1078
      %1098 = vmatprep.subr.bf16.mxu0 %v1077
      %1099 = vmatpush1.bf16.msra.mxu0 %v1076
      %1100 = vmatprep.subr.bf16.mxu0 %v1075
      %1101 = vmatpush1.bf16.msra.mxu0 %v1074
      %1102 = vmatprep.subr.bf16.mxu0 %v1073
      %1103 = vmatpush1.bf16.msra.mxu0 %v1072
      %1104 = vmatprep.subr.bf16.mxu0 %v1071
      %1105 = vmatpush1.bf16.msra.mxu0 %v1070
      %1106 = vmatprep.subr.bf16.mxu0 %v1069
      %1107 = vmatpush1.bf16.msra.mxu0 %v1068
      %1108 = vmatprep.subr.bf16.mxu0 %v1067
      %1109 = vmatpush1.bf16.msra.mxu0 %v1066
      %1110 = vmatprep.subr.bf16.mxu0 %v1065
      %1111 = vmatpush1.bf16.msra.mxu0 %v1064
      %1112 = vmatprep.subr.bf16.mxu0 0
      %1113 = vmatpush2.bf16.msra.mxu0 0
      %1114 = vmatprep.subr.bf16.mxu0 0
      %1115 = vmatpush2.bf16.msra.mxu0 0
      %1116 = vmatprep.subr.bf16.mxu0 0
      %1117 = vmatpush2.bf16.msra.mxu0 0
      %1118 = vmatprep.subr.bf16.mxu0 0
      %1119 = vmatpush2.bf16.msra.mxu0 0
      %1120 = vmatprep.subr.bf16.mxu0 0
      %1121 = vmatpush2.bf16.msra.mxu0 0
      %1122 = vmatprep.subr.bf16.mxu0 0
      %1123 = vmatpush2.bf16.msra.mxu0 0
      %1124 = vmatprep.subr.bf16.mxu0 0
      %1125 = vmatpush2.bf16.msra.mxu0 0
      %1126 = vmatprep.subr.bf16.mxu0 0
      %1127 = vmatpush2.bf16.msra.mxu0 0
      %1128 = vmatprep.mubr.bf16.mxu0 0
      %1129 = vmatmul.mubr.bf16.gmra.mxu0 %v980
      %v1130 = vpop.f32.mrf.mxu0
      %v1131 = vadd.f32 %v1009, %v1130
      %v1132 = vpop.f32.mrf.mxu0
      %v1133 = vadd.f32 %v1013, %v1132
      %v1134 = vpop.f32.mrf.mxu0
      %v1135 = vadd.f32 %v1009, %v1134
      %v1136 = vpop.f32.mrf.mxu0
      %v1137 = vadd.f32 %v1013, %v1136
      %1138 = vmatprep.mubr.bf16.mxu0 0
      %1139 = vmatmul.mubr.bf16.gmra.mxu0 %v981
      %v1140 = vpop.f32.mrf.mxu0
      %v1141 = vadd.f32 %v1009, %v1140
      %v1142 = vpop.f32.mrf.mxu0
      %v1143 = vadd.f32 %v1013, %v1142
      %v1144 = vpop.f32.mrf.mxu0
      %v1145 = vadd.f32 %v1009, %v1144
      %v1146 = vpop.f32.mrf.mxu0
      %v1147 = vadd.f32 %v1013, %v1146
      %1148 = vmatprep.mubr.bf16.mxu0 0
      %1149 = vmatmul.mubr.bf16.gmra.mxu0 %v982
      %v1150 = vpop.f32.mrf.mxu0
      %v1151 = vadd.f32 %v1009, %v1150
      %v1152 = vpop.f32.mrf.mxu0
      %v1153 = vadd.f32 %v1013, %v1152
      %v1154 = vpop.f32.mrf.mxu0
      %v1155 = vadd.f32 %v1009, %v1154
      %v1156 = vpop.f32.mrf.mxu0
      %v1157 = vadd.f32 %v1013, %v1156
      %1158 = vmatprep.mubr.bf16.mxu0 0
      %1159 = vmatmul.mubr.bf16.gmra.mxu0 %v983
      %v1160 = vpop.f32.mrf.mxu0
      %v1161 = vadd.f32 %v1009, %v1160
      %v1162 = vpop.f32.mrf.mxu0
      %v1163 = vadd.f32 %v1013, %v1162
      %v1164 = vpop.f32.mrf.mxu0
      %v1165 = vadd.f32 %v1009, %v1164
      %v1166 = vpop.f32.mrf.mxu0
      %v1167 = vadd.f32 %v1013, %v1166
      %1168 = vmatprep.mubr.bf16.mxu0 0
      %1169 = vmatmul.mubr.bf16.gmra.mxu0 %v984
      %v1170 = vpop.f32.mrf.mxu0
      %v1171 = vadd.f32 %v1009, %v1170
      %v1172 = vpop.f32.mrf.mxu0
      %v1173 = vadd.f32 %v1013, %v1172
      %v1174 = vpop.f32.mrf.mxu0
      %v1175 = vadd.f32 %v1009, %v1174
      %v1176 = vpop.f32.mrf.mxu0
      %v1177 = vadd.f32 %v1013, %v1176
      %1178 = vmatprep.mubr.bf16.mxu0 0
      %1179 = vmatmul.mubr.bf16.gmra.mxu0 %v985
      %v1180 = vpop.f32.mrf.mxu0
      %v1181 = vadd.f32 %v1009, %v1180
      %v1182 = vpop.f32.mrf.mxu0
      %v1183 = vadd.f32 %v1013, %v1182
      %v1184 = vpop.f32.mrf.mxu0
      %v1185 = vadd.f32 %v1009, %v1184
      %v1186 = vpop.f32.mrf.mxu0
      %v1187 = vadd.f32 %v1013, %v1186
      %1188 = vmatprep.mubr.bf16.mxu0 0
      %1189 = vmatmul.mubr.bf16.gmra.mxu0 %v986
      %v1190 = vpop.f32.mrf.mxu0
      %v1191 = vadd.f32 %v1009, %v1190
      %v1192 = vpop.f32.mrf.mxu0
      %v1193 = vadd.f32 %v1013, %v1192
      %v1194 = vpop.f32.mrf.mxu0
      %v1195 = vadd.f32 %v1009, %v1194
      %v1196 = vpop.f32.mrf.mxu0
      %v1197 = vadd.f32 %v1013, %v1196
      %1198 = vmatprep.mubr.bf16.mxu0 0
      %1199 = vmatmul.mubr.bf16.gmra.mxu0 %v987
      %v1200 = vpop.f32.mrf.mxu0
      %v1201 = vadd.f32 %v1009, %v1200
      %v1202 = vpop.f32.mrf.mxu0
      %v1203 = vadd.f32 %v1013, %v1202
      %v1204 = vpop.f32.mrf.mxu0
      %v1205 = vadd.f32 %v1009, %v1204
      %v1206 = vpop.f32.mrf.mxu0
      %v1207 = vadd.f32 %v1013, %v1206
      %1208 = vdwg.mxu0
      %v1209 = vpack.c.bf16 %v1135, %v1131
      %v1210 = vpack.c.bf16 %v1137, %v1133
      %v1211 = vpack.c.bf16 %v1145, %v1141
      %v1212 = vpack.c.bf16 %v1147, %v1143
      %v1213 = vpack.c.bf16 %v1155, %v1151
      %v1214 = vpack.c.bf16 %v1157, %v1153
      %v1215 = vpack.c.bf16 %v1165, %v1161
      %v1216 = vpack.c.bf16 %v1167, %v1163
      %v1217 = vpack.c.bf16 %v1175, %v1171
      %v1218 = vpack.c.bf16 %v1177, %v1173
      %v1219 = vpack.c.bf16 %v1185, %v1181
      %v1220 = vpack.c.bf16 %v1187, %v1183
      %v1221 = vpack.c.bf16 %v1195, %v1191
      %v1222 = vpack.c.bf16 %v1197, %v1193
      %v1223 = vpack.c.bf16 %v1205, %v1201
      %v1224 = vpack.c.bf16 %v1207, %v1203
      %v1241 = vunpack.c.l.b16 %v1209
      %v1242 = vunpack.c.l.b16 %v1210
      %v1243 = vunpack.c.h.b16 %v1209
      %v1244 = vunpack.c.h.b16 %v1210
      %v1245 = vunpack.c.l.b16 %v1211
      %v1246 = vunpack.c.l.b16 %v1212
      %v1247 = vunpack.c.h.b16 %v1211
      %v1248 = vunpack.c.h.b16 %v1212
      %v1249 = vunpack.c.l.b16 %v1213
      %v1250 = vunpack.c.l.b16 %v1214
      %v1251 = vunpack.c.h.b16 %v1213
      %v1252 = vunpack.c.h.b16 %v1214
      %v1253 = vunpack.c.l.b16 %v1215
      %v1254 = vunpack.c.l.b16 %v1216
      %v1255 = vunpack.c.h.b16 %v1215
      %v1256 = vunpack.c.h.b16 %v1216
      %v1257 = vunpack.c.l.b16 %v1217
      %v1258 = vunpack.c.l.b16 %v1218
      %v1259 = vunpack.c.h.b16 %v1217
      %v1260 = vunpack.c.h.b16 %v1218
      %v1261 = vunpack.c.l.b16 %v1219
      %v1262 = vunpack.c.l.b16 %v1220
      %v1263 = vunpack.c.h.b16 %v1219
      %v1264 = vunpack.c.h.b16 %v1220
      %v1265 = vunpack.c.l.b16 %v1221
      %v1266 = vunpack.c.l.b16 %v1222
      %v1267 = vunpack.c.h.b16 %v1221
      %v1268 = vunpack.c.h.b16 %v1222
      %v1269 = vunpack.c.l.b16 %v1223
      %v1270 = vunpack.c.l.b16 %v1224
      %v1271 = vunpack.c.h.b16 %v1223
      %v1272 = vunpack.c.h.b16 %v1224
      %v1273 = vpack.c.b16 %v1242, %v1241
      %v1274 = vpack.c.b16 %v1244, %v1243
      %v1275 = vpack.c.b16 %v1246, %v1245
      %v1276 = vpack.c.b16 %v1248, %v1247
      %v1277 = vpack.c.b16 %v1250, %v1249
      %v1278 = vpack.c.b16 %v1252, %v1251
      %v1279 = vpack.c.b16 %v1254, %v1253
      %v1280 = vpack.c.b16 %v1256, %v1255
      %v1281 = vpack.c.b16 %v1258, %v1257
      %v1282 = vpack.c.b16 %v1260, %v1259
      %v1283 = vpack.c.b16 %v1262, %v1261
      %v1284 = vpack.c.b16 %v1264, %v1263
      %v1285 = vpack.c.b16 %v1266, %v1265
      %v1286 = vpack.c.b16 %v1268, %v1267
      %v1287 = vpack.c.b16 %v1270, %v1269
      %v1288 = vpack.c.b16 %v1272, %v1271
      %1305 = vst [vmem:[%s358] sm:$0xff] %v1273
      %1306 = vst [vmem:[%s358 + $0x8] sm:$0xff] %v1274
      %1307 = vst [vmem:[%s358 + $0x10] sm:$0xff] %v1275
      %1308 = vst [vmem:[%s358 + $0x18] sm:$0xff] %v1276
      %1309 = vst [vmem:[%s358 + $0x20] sm:$0xff] %v1277
      %1310 = vst [vmem:[%s358 + $0x28] sm:$0xff] %v1278
      %1311 = vst [vmem:[%s358 + $0x30] sm:$0xff] %v1279
      %1312 = vst [vmem:[%s358 + $0x38] sm:$0xff] %v1280
      %1313 = vst [vmem:[%s358 + $0x40] sm:$0xff] %v1281
      %1314 = vst [vmem:[%s358 + $0x48] sm:$0xff] %v1282
      %1315 = vst [vmem:[%s358 + $0x50] sm:$0xff] %v1283
      %1316 = vst [vmem:[%s358 + $0x58] sm:$0xff] %v1284
      %1317 = vst [vmem:[%s358 + $0x60] sm:$0xff] %v1285
      %1318 = vst [vmem:[%s358 + $0x68] sm:$0xff] %v1286
      %1319 = vst [vmem:[%s358 + $0x70] sm:$0xff] %v1287
      %1320 = vst [vmem:[%s358 + $0x78] sm:$0xff] %v1288
      %s1321 = smul.u32 16, %s20
      %p1322 = scmp.lt.s32.totalorder %s1321, 31
      %s1323 = scalar_select %p1322, %s1321, 31
      %s1324 = smul.addr %s1323, 2
      %s1325 = smul.addr %s1324, 4
      %s1326 = scalar_lea.vmem %s9, %s1325
      // Predicated region
      $region57: #{generator_forward.1} parent=55 // pred_check
        %p1327 = pneg %p237
      $region58: #{generator_forward.1} parent=55 // pred_check_branch
        %1329 = sbr.rel (%p1327) target = $region60
      $region59: #{generator_forward.1} parent=55 // pred_region
        %s1330 = smul.u32 16, %s20
      $region60: #{generator_forward.1} parent=55 // pred_fallthru
        _
    $region56: #{generator_forward.1} parent=5 // pred_fallthru
      _
    %p1331 = scmp.le.s32.totalorder 2, %s15
    // Predicated region
    $region61: #{generator_forward.1} parent=5 // pred_check
      %p1332 = pneg %p1331
    $region62: #{generator_forward.1} parent=5 // pred_check_branch
      %1334 = sbr.rel (%p1332) target = $region64
    $region63: #{generator_forward.1} parent=5 // pred_region
      %s1335 = ssub.s32 %s15, 2
      // Predicated region
      $region65: #{generator_forward.1} parent=63 // pred_check
        %p1336 = pneg %p243
      $region66: #{generator_forward.1} parent=63 // pred_check_branch
        %1338 = sbr.rel (%p1336) target = $region68
      $region67: #{generator_forward.1} parent=63 // pred_region
        %s1339 = smul.u32 16, %s21
        %p1340 = scmp.lt.s32.totalorder %s1339, 31
        %s1341 = scalar_select %p1340, %s1339, 31
        %s1342 = smul.addr %s1341, 2
        %s1343 = smul.addr %s1342, 4
        %s1344 = scalar_lea.vmem %s9, %s1343
      $region68: #{generator_forward.1} parent=63 // pred_fallthru
        _
    $region64: #{generator_forward.1} parent=5 // pred_fallthru
      _
  $region6: #{generator_forward.1} parent=0 // loop_footer
    %s19 = sadd.s32 1, %s15
  $region7: #{generator_forward.1} parent=0 // loop_footer_branch
    %14 = sbr.rel target = $region3
  $region8: #{generator_forward.1} parent=0 // loop_exit
    _

</llo_original>
